<compile_context>
chip_gen: v7x
topology: tpu7x:2x2x1
jax: 0.10.0
libtpu: 0.0.40
codegen_flags: <defaults>
</compile_context>

<pallas_src>
import functools

import jax
import jax.numpy as jnp
from jax.experimental import pallas as pl
from jax.experimental.pallas import tpu as pltpu


# ---------------------------------------------------------------------------
# Pallas kernels
# ---------------------------------------------------------------------------
def bilstm_pair_kernel(max_len_ref,      # SMEM (2,) int32 (scalar prefetch)
                       x_ref,            # (T*Bp, E) f32, time-major flattened embeds
                       len_ref,          # (Bp, 1) int32
                       w_ih_ref,         # (E, 8H) f32  [fwd i f g o | bwd i f g o]
                       w_hh_ref,         # (2, H, 4H) f32  [fwd, bwd]
                       b_ref,            # (1, 8H) f32  (b_ih + b_hh, both dirs)
                       out_ref,          # (Bp, 2H) f32 [h_fwd | h_bwd]
                       xproj_ref,        # scratch (T*Bp, 8H) f32
                       *, hidden_dim, batch_pad):
    H = hidden_dim
    Bp = batch_pad
    g = pl.program_id(0)
    max_len = max_len_ref[g]

    # Hoisted input projection (+ bias) for BOTH directions and all timesteps:
    # a single lane-dense MXU matmul, off the serial critical path.
    xproj_ref[...] = (
        jnp.dot(x_ref[...], w_ih_ref[...], preferred_element_type=jnp.float32)
        + b_ref[...])

    lengths = len_ref[...]               # (Bp, 1) int32
    w_hh_f = w_hh_ref[0]                 # (H, 4H)
    w_hh_b = w_hh_ref[1]                 # (H, 4H)

    def cell(gates, c_prev):
        # PyTorch gate order (i, f, g, o); gates is (Bp, 4H) lane-dense.
        i = jax.nn.sigmoid(gates[:, 0 * H:1 * H])
        f = jax.nn.sigmoid(gates[:, 1 * H:2 * H])
        gg = jnp.tanh(gates[:, 2 * H:3 * H])
        o = jax.nn.sigmoid(gates[:, 3 * H:4 * H])
        c_new = f * c_prev + i * gg
        return o * jnp.tanh(c_new), c_new

    def step(s, carry):
        h_f, c_f, h_b, c_b = carry
        t_b = max_len - 1 - s            # backward-direction timestep
        row_f = pl.multiple_of(s * Bp, Bp)
        row_b = pl.multiple_of(t_b * Bp, Bp)
        xin_f = xproj_ref[pl.ds(row_f, Bp), :]    # (Bp, 8H)
        xin_b = xproj_ref[pl.ds(row_b, Bp), :]
        # Two independent (Bp,H)@(H,4H) matmuls: their latencies overlap.
        gates_f = xin_f[:, :4 * H] + jnp.dot(
            h_f, w_hh_f, preferred_element_type=jnp.float32)
        gates_b = xin_b[:, 4 * H:] + jnp.dot(
            h_b, w_hh_b, preferred_element_type=jnp.float32)
        hf_new, cf_new = cell(gates_f, c_f)
        hb_new, cb_new = cell(gates_b, c_b)
        # pack_padded_sequence semantics: freeze state past each row's length;
        # backward direction only starts updating at t == length-1.
        upd_f = lengths > s
        upd_b = lengths > t_b
        h_f = jnp.where(upd_f, hf_new, h_f)
        c_f = jnp.where(upd_f, cf_new, c_f)
        h_b = jnp.where(upd_b, hb_new, h_b)
        c_b = jnp.where(upd_b, cb_new, c_b)
        return h_f, c_f, h_b, c_b

    z = jnp.zeros((Bp, H), jnp.float32)
    h_f, _, h_b, _ = jax.lax.fori_loop(0, max_len, step, (z, z, z, z))

    # Lane-dense final hidden state; equals h_n.permute(1,0,2).reshape(B, 2H).
    out_ref[...] = jnp.concatenate([h_f, h_b], axis=1)


def cosine_kernel(q_ref, r_ref, out_ref):
    """Row-wise cosine similarity (matches torch CosineSimilarity(dim=1),
    which clamps each norm to eps=1e-8 before dividing)."""
    q = q_ref[...]
    r = r_ref[...]
    eps = jnp.float32(1e-8)
    dot = jnp.sum(q * r, axis=1, keepdims=True)
    nq = jnp.sqrt(jnp.sum(q * q, axis=1, keepdims=True))
    nr = jnp.sqrt(jnp.sum(r * r, axis=1, keepdims=True))
    out_ref[...] = dot / (jnp.maximum(nq, eps) * jnp.maximum(nr, eps))


# ---------------------------------------------------------------------------
# Wrappers
# ---------------------------------------------------------------------------
def bilstm_pair_pallas(x_pair, len_pair, max_lens, lstm_params,
                       *, hidden_dim, batch_pad, seq_len):
    """x_pair: (2, T*Bp, E), len_pair: (2, Bp, 1), max_lens: (2,) -> (2, Bp, 2H)."""
    H = hidden_dim
    Bp = batch_pad
    T = seq_len
    E = x_pair.shape[-1]

    return pl.pallas_call(
        functools.partial(bilstm_pair_kernel, hidden_dim=H, batch_pad=Bp),
        out_shape=jax.ShapeDtypeStruct((2, Bp, 2 * H), jnp.float32),
        grid_spec=pltpu.PrefetchScalarGridSpec(
            num_scalar_prefetch=1,
            grid=(2,),                                  # 0 = sentence, 1 = relation
            in_specs=[
                pl.BlockSpec((None, T * Bp, E), lambda g, ml: (g, 0, 0)),
                pl.BlockSpec((None, Bp, 1), lambda g, ml: (g, 0, 0)),
                pl.BlockSpec((None, E, 8 * H), lambda g, ml: (g, 0, 0)),
                pl.BlockSpec((None, 2, H, 4 * H), lambda g, ml: (g, 0, 0, 0)),
                pl.BlockSpec((None, 1, 8 * H), lambda g, ml: (g, 0, 0)),
            ],
            out_specs=pl.BlockSpec((None, Bp, 2 * H), lambda g, ml: (g, 0, 0)),
            scratch_shapes=[pltpu.VMEM((T * Bp, 8 * H), jnp.float32)],
        ),
        compiler_params=pltpu.CompilerParams(
            dimension_semantics=("parallel",)),
    )(max_lens, x_pair, len_pair,
      lstm_params["w_ih"], lstm_params["w_hh"], lstm_params["b"])


def cosine_pallas(q_emb, r_emb):
    B = q_emb.shape[0]
    out = pl.pallas_call(
        cosine_kernel,
        out_shape=jax.ShapeDtypeStruct((B, 1), jnp.float32),
        in_specs=[pl.BlockSpec(memory_space=pltpu.VMEM)] * 2,
        out_specs=pl.BlockSpec(memory_space=pltpu.VMEM),
    )(q_emb, r_emb)
    return out[:, 0]


def similarity_forward(params, question_list, relation_list,
                       reverse_question_indexs, reverse_relation_indexs,
                       question_lengths, relation_lengths):
    """Mirror of SimilarityModel.forward (device arg dropped)."""
    vocab = params["vocab_embedding"]
    q_emb = jnp.take(vocab, question_list, axis=0)    # (T, B, E), frozen-embedding glue
    r_emb = jnp.take(vocab, relation_list, axis=0)

    T, B, E = q_emb.shape
    H = params["hidden_dim"]
    Bp = max(8, ((B + 7) // 8) * 8)                   # pad batch to full sublanes

    def prep(emb, lengths):
        pad = Bp - B
        emb_p = jnp.pad(emb, ((0, 0), (0, pad), (0, 0)))
        len_p = jnp.pad(lengths.astype(jnp.int32), ((0, pad),))
        return emb_p.reshape(T * Bp, E), len_p.reshape(Bp, 1)

    qx, qlen = prep(q_emb, question_lengths)
    rx, rlen = prep(r_emb, relation_lengths)
    x_pair = jnp.stack([qx, rx], axis=0)              # (2, T*Bp, E)
    len_pair = jnp.stack([qlen, rlen], axis=0)        # (2, Bp, 1)
    max_lens = jnp.stack([jnp.max(question_lengths),
                          jnp.max(relation_lengths)]).astype(jnp.int32)

    h_pair = bilstm_pair_pallas(x_pair, len_pair, max_lens, params["lstm"],
                                hidden_dim=H, batch_pad=Bp, seq_len=T)

    question_embedding = h_pair[0, :B]                # (B, 2H)
    relation_embedding = h_pair[1, :B]

    # un-sort back to original order (glue, mirrors `[reverse_*_indexs]`)
    question_embedding = jnp.take(question_embedding, reverse_question_indexs, axis=0)
    relation_embedding = jnp.take(relation_embedding, reverse_relation_indexs, axis=0)

    return cosine_pallas(question_embedding, relation_embedding)


# ---------------------------------------------------------------------------
# Deterministic parameter init (PyTorch LSTM-style uniform(-1/sqrt(H), 1/sqrt(H)))
# NOTE: to load real PyTorch weights, transpose weight_ih_l0 (4H,E)->(E,4H),
#       weight_hh_l0 (4H,H)->(H,4H) and concat fwd|bwd along the last axis.
# ---------------------------------------------------------------------------
def init_bilstm_params(key, E, H):
    bound = 1.0 / (H ** 0.5)
    ks = jax.random.split(key, 8)

    def u(k, shape):
        return jax.random.uniform(k, shape, jnp.float32, -bound, bound)

    w_ih = jnp.concatenate([u(ks[0], (E, 4 * H)),                 # fwd (i,f,g,o)
                            u(ks[1], (E, 4 * H))], axis=1)        # bwd (i,f,g,o)
    w_hh = jnp.stack([u(ks[2], (H, 4 * H)),
                      u(ks[3], (H, 4 * H))], axis=0)              # (2, H, 4H)
    b = jnp.concatenate([u(ks[4], (1, 4 * H)) + u(ks[5], (1, 4 * H)),
                         u(ks[6], (1, 4 * H)) + u(ks[7], (1, 4 * H))], axis=1)
    return {"w_ih": w_ih, "w_hh": w_hh, "b": b}


# ---------------------------------------------------------------------------
# Main
# ---------------------------------------------------------------------------
if __name__ == "__main__":
    B, T, E, H, V = 2, 8, 32, 32, 50  # batch, seq, embedding_dim, hidden_dim, vocab

    key = jax.random.PRNGKey(0)
    k_emb, k_q, k_r, k_sent, k_rel = jax.random.split(key, 5)

    sent = init_bilstm_params(k_sent, E, H)
    rel = init_bilstm_params(k_rel, E, H)
    params = {
        "vocab_embedding": jax.random.normal(k_emb, (V, E), jnp.float32),
        "hidden_dim": H,
        # Both encoders stacked on a leading axis (0=sentence, 1=relation) so
        # they run as two parallel grid steps of a single pallas_call.
        "lstm": jax.tree_util.tree_map(lambda a, b: jnp.stack([a, b], axis=0),
                                       sent, rel),
    }

    # padded token ids, seq-major (T, B), lengths sorted descending
    question_list = jax.random.randint(k_q, (T, B), 0, V, dtype=jnp.int32)
    relation_list = jax.random.randint(k_r, (T, B), 0, V, dtype=jnp.int32)
    question_lengths = jnp.array([8, 5], dtype=jnp.int32)
    relation_lengths = jnp.array([7, 4], dtype=jnp.int32)
    reverse_question_indexs = jnp.array([1, 0], dtype=jnp.int32)
    reverse_relation_indexs = jnp.array([0, 1], dtype=jnp.int32)

    sims = similarity_forward(params, question_list, relation_list,
                              reverse_question_indexs, reverse_relation_indexs,
                              question_lengths, relation_lengths)
    sims = jax.block_until_ready(sims)
    assert sims.shape == (B,)
    print("KERNEL_OK")
</pallas_src>

<mosaic_0001>
module attributes {stable_mosaic.version = 11 : i64} {
  func.func @bilstm_pair_kernel(%arg0: i32, %arg1: memref<2xi32, #tpu.memory_space<smem>>, %arg2: memref<1x64x32xf32, #tpu.memory_space<vmem>>, %arg3: memref<1x8x1xi32, #tpu.memory_space<vmem>>, %arg4: memref<1x32x256xf32, #tpu.memory_space<vmem>>, %arg5: memref<1x2x32x128xf32, #tpu.memory_space<vmem>>, %arg6: memref<1x1x256xf32, #tpu.memory_space<vmem>>, %arg7: memref<1x8x64xf32, #tpu.memory_space<vmem>>, %arg8: memref<64x256xf32, #tpu.memory_space<vmem>>) attributes {dimension_semantics = [#tpu.dimension_semantics<parallel>], iteration_bounds = array<i64: 2>, scalar_prefetch = 1 : i64, scratch_operands = 1 : i64, tpu.core_type = #tpu.core_type<tc>, window_params = [{transform_indices = @transform_0, window_bounds = array<i64: 1, 64, 32>}, {transform_indices = @transform_1, window_bounds = array<i64: 1, 8, 1>}, {transform_indices = @transform_2, window_bounds = array<i64: 1, 32, 256>}, {transform_indices = @transform_3, window_bounds = array<i64: 1, 2, 32, 128>}, {transform_indices = @transform_4, window_bounds = array<i64: 1, 1, 256>}, {transform_indices = @transform_5, window_bounds = array<i64: 1, 8, 64>}]} {
    %0 = arith.index_cast %arg0 : i32 to index
    %1 = memref.load %arg1[%0] : memref<2xi32, #tpu.memory_space<smem>>
    %c0 = arith.constant 0 : index
    %c0_0 = arith.constant 0 : index
    %c0_1 = arith.constant 0 : index
    %2 = vector.load %arg2[%c0, %c0_0, %c0_1] : memref<1x64x32xf32, #tpu.memory_space<vmem>>, vector<1x64x32xf32>
    %3 = vector.shape_cast %2 : vector<1x64x32xf32> to vector<64x32xf32>
    %c0_2 = arith.constant 0 : index
    %c0_3 = arith.constant 0 : index
    %c0_4 = arith.constant 0 : index
    %4 = vector.load %arg4[%c0_2, %c0_3, %c0_4] : memref<1x32x256xf32, #tpu.memory_space<vmem>>, vector<1x32x256xf32>
    %5 = vector.shape_cast %4 : vector<1x32x256xf32> to vector<32x256xf32>
    %cst = arith.constant dense<0.000000e+00> : vector<64x256xf32>
    %6 = tpu.matmul %3, %5, %cst {dimension_numbers = #tpu.dot_dimension_numbers<[1], [0], [0], [1], [0, 0, 1, 1], [], []>} : vector<64x32xf32>, vector<32x256xf32>, vector<64x256xf32> -> vector<64x256xf32>
    %c0_5 = arith.constant 0 : index
    %c0_6 = arith.constant 0 : index
    %c0_7 = arith.constant 0 : index
    %7 = vector.load %arg6[%c0_5, %c0_6, %c0_7] : memref<1x1x256xf32, #tpu.memory_space<vmem>>, vector<1x1x256xf32>
    %8 = vector.shape_cast %7 : vector<1x1x256xf32> to vector<1x256xf32>
    %9 = vector.broadcast %8 : vector<1x256xf32> to vector<64x256xf32>
    %10 = arith.addf %6, %9 : vector<64x256xf32>
    %c0_8 = arith.constant 0 : index
    %c0_9 = arith.constant 0 : index
    %11 = vector.load %arg8[%c0_8, %c0_9] : memref<64x256xf32, #tpu.memory_space<vmem>>, vector<64x256xf32>
    tpu.vector_store %arg8[%c0_8, %c0_9], %10 {strides = array<i32>} : memref<64x256xf32, #tpu.memory_space<vmem>>, vector<64x256xf32>,
    %c0_10 = arith.constant 0 : index
    %c0_11 = arith.constant 0 : index
    %c0_12 = arith.constant 0 : index
    %12 = vector.load %arg3[%c0_10, %c0_11, %c0_12] : memref<1x8x1xi32, #tpu.memory_space<vmem>>, vector<1x8x1xi32>
    %13 = vector.shape_cast %12 : vector<1x8x1xi32> to vector<8x1xi32>
    %c0_13 = arith.constant 0 : index
    %c0_14 = arith.constant 0 : index
    %c0_15 = arith.constant 0 : index
    %c0_16 = arith.constant 0 : index
    %14 = vector.load %arg5[%c0_13, %c0_14, %c0_15, %c0_16] : memref<1x2x32x128xf32, #tpu.memory_space<vmem>>, vector<1x1x32x128xf32>
    %15 = vector.shape_cast %14 : vector<1x1x32x128xf32> to vector<32x128xf32>
    %c0_17 = arith.constant 0 : index
    %c1 = arith.constant 1 : index
    %c0_18 = arith.constant 0 : index
    %c0_19 = arith.constant 0 : index
    %16 = vector.load %arg5[%c0_17, %c1, %c0_18, %c0_19] : memref<1x2x32x128xf32, #tpu.memory_space<vmem>>, vector<1x1x32x128xf32>
    %17 = vector.shape_cast %16 : vector<1x1x32x128xf32> to vector<32x128xf32>
    %cst_20 = arith.constant 0.000000e+00 : f32
    %18 = vector.broadcast %cst_20 : f32 to vector<8x32xf32>
    %c0_i32 = arith.constant 0 : i32
    %19 = arith.subi %1, %c0_i32 : i32
    %20 = arith.addi %c0_i32, %19 : i32
    %c1_i32 = arith.constant 1 : i32
    %21:4 = scf.for %arg9 = %c0_i32 to %20 step %c1_i32 iter_args(%arg10 = %18, %arg11 = %18, %arg12 = %18, %arg13 = %18) -> (vector<8x32xf32>, vector<8x32xf32>, vector<8x32xf32>, vector<8x32xf32>)  : i32 {
      %c1_i32_24 = arith.constant 1 : i32
      %26 = arith.subi %1, %c1_i32_24 : i32
      %27 = arith.subi %26, %arg9 : i32
      %c8_i32 = arith.constant 8 : i32
      %28 = arith.muli %arg9, %c8_i32 : i32
      %29 = tpu.assume_multiple %28, 8 : i32
      %c8_i32_25 = arith.constant 8 : i32
      %30 = arith.muli %27, %c8_i32_25 : i32
      %31 = tpu.assume_multiple %30, 8 : i32
      %32 = arith.index_cast %29 : i32 to index
      %c0_26 = arith.constant 0 : index
      %33 = vector.load %arg8[%32, %c0_26] : memref<64x256xf32, #tpu.memory_space<vmem>>, vector<8x256xf32>
      %34 = arith.index_cast %31 : i32 to index
      %c0_27 = arith.constant 0 : index
      %35 = vector.load %arg8[%34, %c0_27] : memref<64x256xf32, #tpu.memory_space<vmem>>, vector<8x256xf32>
      %36 = vector.extract_strided_slice %33 {offsets = [0, 0], sizes = [8, 128], strides = [1, 1]} : vector<8x256xf32> to vector<8x128xf32>
      %cst_28 = arith.constant dense<0.000000e+00> : vector<8x128xf32>
      %37 = tpu.matmul %arg10, %15, %cst_28 {dimension_numbers = #tpu.dot_dimension_numbers<[1], [0], [0], [1], [0, 0, 1, 1], [], []>} : vector<8x32xf32>, vector<32x128xf32>, vector<8x128xf32> -> vector<8x128xf32>
      %38 = arith.addf %36, %37 : vector<8x128xf32>
      %39 = vector.extract_strided_slice %35 {offsets = [0, 128], sizes = [8, 128], strides = [1, 1]} : vector<8x256xf32> to vector<8x128xf32>
      %cst_29 = arith.constant dense<0.000000e+00> : vector<8x128xf32>
      %40 = tpu.matmul %arg12, %17, %cst_29 {dimension_numbers = #tpu.dot_dimension_numbers<[1], [0], [0], [1], [0, 0, 1, 1], [], []>} : vector<8x32xf32>, vector<32x128xf32>, vector<8x128xf32> -> vector<8x128xf32>
      %41 = arith.addf %39, %40 : vector<8x128xf32>
      %42 = vector.extract_strided_slice %38 {offsets = [0, 0], sizes = [8, 32], strides = [1, 1]} : vector<8x128xf32> to vector<8x32xf32>
      %43 = arith.negf %42 : vector<8x32xf32>
      %44 = math.exp %43 : vector<8x32xf32>
      %cst_30 = arith.constant 1.000000e+00 : f32
      %45 = vector.broadcast %cst_30 : f32 to vector<8x32xf32>
      %46 = arith.addf %45, %44 : vector<8x32xf32>
      %47 = arith.divf %45, %46 : vector<8x32xf32>
      %48 = vector.extract_strided_slice %38 {offsets = [0, 32], sizes = [8, 32], strides = [1, 1]} : vector<8x128xf32> to vector<8x32xf32>
      %49 = arith.negf %48 : vector<8x32xf32>
      %50 = math.exp %49 : vector<8x32xf32>
      %cst_31 = arith.constant 1.000000e+00 : f32
      %51 = vector.broadcast %cst_31 : f32 to vector<8x32xf32>
      %52 = arith.addf %51, %50 : vector<8x32xf32>
      %53 = arith.divf %51, %52 : vector<8x32xf32>
      %54 = vector.extract_strided_slice %38 {offsets = [0, 64], sizes = [8, 32], strides = [1, 1]} : vector<8x128xf32> to vector<8x32xf32>
      %55 = math.tanh %54 : vector<8x32xf32>
      %56 = vector.extract_strided_slice %38 {offsets = [0, 96], sizes = [8, 32], strides = [1, 1]} : vector<8x128xf32> to vector<8x32xf32>
      %57 = arith.negf %56 : vector<8x32xf32>
      %58 = math.exp %57 : vector<8x32xf32>
      %cst_32 = arith.constant 1.000000e+00 : f32
      %59 = vector.broadcast %cst_32 : f32 to vector<8x32xf32>
      %60 = arith.addf %59, %58 : vector<8x32xf32>
      %61 = arith.divf %59, %60 : vector<8x32xf32>
      %62 = arith.mulf %53, %arg11 : vector<8x32xf32>
      %63 = arith.mulf %47, %55 : vector<8x32xf32>
      %64 = arith.addf %62, %63 : vector<8x32xf32>
      %65 = math.tanh %64 : vector<8x32xf32>
      %66 = arith.mulf %61, %65 : vector<8x32xf32>
      %67 = vector.extract_strided_slice %41 {offsets = [0, 0], sizes = [8, 32], strides = [1, 1]} : vector<8x128xf32> to vector<8x32xf32>
      %68 = arith.negf %67 : vector<8x32xf32>
      %69 = math.exp %68 : vector<8x32xf32>
      %cst_33 = arith.constant 1.000000e+00 : f32
      %70 = vector.broadcast %cst_33 : f32 to vector<8x32xf32>
      %71 = arith.addf %70, %69 : vector<8x32xf32>
      %72 = arith.divf %70, %71 : vector<8x32xf32>
      %73 = vector.extract_strided_slice %41 {offsets = [0, 32], sizes = [8, 32], strides = [1, 1]} : vector<8x128xf32> to vector<8x32xf32>
      %74 = arith.negf %73 : vector<8x32xf32>
      %75 = math.exp %74 : vector<8x32xf32>
      %cst_34 = arith.constant 1.000000e+00 : f32
      %76 = vector.broadcast %cst_34 : f32 to vector<8x32xf32>
      %77 = arith.addf %76, %75 : vector<8x32xf32>
      %78 = arith.divf %76, %77 : vector<8x32xf32>
      %79 = vector.extract_strided_slice %41 {offsets = [0, 64], sizes = [8, 32], strides = [1, 1]} : vector<8x128xf32> to vector<8x32xf32>
      %80 = math.tanh %79 : vector<8x32xf32>
      %81 = vector.extract_strided_slice %41 {offsets = [0, 96], sizes = [8, 32], strides = [1, 1]} : vector<8x128xf32> to vector<8x32xf32>
      %82 = arith.negf %81 : vector<8x32xf32>
      %83 = math.exp %82 : vector<8x32xf32>
      %cst_35 = arith.constant 1.000000e+00 : f32
      %84 = vector.broadcast %cst_35 : f32 to vector<8x32xf32>
      %85 = arith.addf %84, %83 : vector<8x32xf32>
      %86 = arith.divf %84, %85 : vector<8x32xf32>
      %87 = arith.mulf %78, %arg13 : vector<8x32xf32>
      %88 = arith.mulf %72, %80 : vector<8x32xf32>
      %89 = arith.addf %87, %88 : vector<8x32xf32>
      %90 = math.tanh %89 : vector<8x32xf32>
      %91 = arith.mulf %86, %90 : vector<8x32xf32>
      %92 = vector.broadcast %arg9 : i32 to vector<8x1xi32>
      %93 = arith.cmpi sgt, %13, %92 : vector<8x1xi32>
      %94 = vector.broadcast %27 : i32 to vector<8x1xi32>
      %95 = arith.cmpi sgt, %13, %94 : vector<8x1xi32>
      %96 = vector.shape_cast %93 : vector<8x1xi1> to vector<8x1xi1>
      %97 = vector.broadcast %96 : vector<8x1xi1> to vector<8x32xi1>
      %98 = arith.select %97, %66, %arg10 : vector<8x32xi1>, vector<8x32xf32>
      %99 = vector.shape_cast %93 : vector<8x1xi1> to vector<8x1xi1>
      %100 = vector.broadcast %99 : vector<8x1xi1> to vector<8x32xi1>
      %101 = arith.select %100, %64, %arg11 : vector<8x32xi1>, vector<8x32xf32>
      %102 = vector.shape_cast %95 : vector<8x1xi1> to vector<8x1xi1>
      %103 = vector.broadcast %102 : vector<8x1xi1> to vector<8x32xi1>
      %104 = arith.select %103, %91, %arg12 : vector<8x32xi1>, vector<8x32xf32>
      %105 = vector.shape_cast %95 : vector<8x1xi1> to vector<8x1xi1>
      %106 = vector.broadcast %105 : vector<8x1xi1> to vector<8x32xi1>
      %107 = arith.select %106, %89, %arg13 : vector<8x32xi1>, vector<8x32xf32>
      scf.yield %98, %101, %104, %107 : vector<8x32xf32>, vector<8x32xf32>, vector<8x32xf32>, vector<8x32xf32>
    }
    %22 = tpu.concatenate %21#0, %21#2 in 1 : vector<8x32xf32>, vector<8x32xf32> -> vector<8x64xf32>
    %c0_21 = arith.constant 0 : index
    %c0_22 = arith.constant 0 : index
    %c0_23 = arith.constant 0 : index
    %23 = vector.load %arg7[%c0_21, %c0_22, %c0_23] : memref<1x8x64xf32, #tpu.memory_space<vmem>>, vector<1x8x64xf32>
    %24 = vector.shape_cast %23 : vector<1x8x64xf32> to vector<8x64xf32>
    %25 = vector.shape_cast %22 : vector<8x64xf32> to vector<1x8x64xf32>
    tpu.vector_store %arg7[%c0_21, %c0_22, %c0_23], %25 {strides = array<i32>} : memref<1x8x64xf32, #tpu.memory_space<vmem>>, vector<1x8x64xf32>,
    return
  }
  func.func @transform_0(%arg0: i32, %arg1: memref<2xi32, #tpu.memory_space<smem>>) -> (i32, i32, i32) {
    %c0_i32 = arith.constant 0 : i32
    %c0_i32_0 = arith.constant 0 : i32
    %c0_i32_1 = arith.constant 0 : i32
    return %arg0, %c0_i32, %c0_i32_0 : i32, i32, i32
  }
  func.func @transform_1(%arg0: i32, %arg1: memref<2xi32, #tpu.memory_space<smem>>) -> (i32, i32, i32) {
    %c0_i32 = arith.constant 0 : i32
    %c0_i32_0 = arith.constant 0 : i32
    %c0_i32_1 = arith.constant 0 : i32
    return %arg0, %c0_i32, %c0_i32_0 : i32, i32, i32
  }
  func.func @transform_2(%arg0: i32, %arg1: memref<2xi32, #tpu.memory_space<smem>>) -> (i32, i32, i32) {
    %c0_i32 = arith.constant 0 : i32
    %c0_i32_0 = arith.constant 0 : i32
    %c0_i32_1 = arith.constant 0 : i32
    return %arg0, %c0_i32, %c0_i32_0 : i32, i32, i32
  }
  func.func @transform_3(%arg0: i32, %arg1: memref<2xi32, #tpu.memory_space<smem>>) -> (i32, i32, i32, i32) {
    %c0_i32 = arith.constant 0 : i32
    %c0_i32_0 = arith.constant 0 : i32
    %c0_i32_1 = arith.constant 0 : i32
    %c0_i32_2 = arith.constant 0 : i32
    return %arg0, %c0_i32, %c0_i32_0, %c0_i32_1 : i32, i32, i32, i32
  }
  func.func @transform_4(%arg0: i32, %arg1: memref<2xi32, #tpu.memory_space<smem>>) -> (i32, i32, i32) {
    %c0_i32 = arith.constant 0 : i32
    %c0_i32_0 = arith.constant 0 : i32
    %c0_i32_1 = arith.constant 0 : i32
    return %arg0, %c0_i32, %c0_i32_0 : i32, i32, i32
  }
  func.func @transform_5(%arg0: i32, %arg1: memref<2xi32, #tpu.memory_space<smem>>) -> (i32, i32, i32) {
    %c0_i32 = arith.constant 0 : i32
    %c0_i32_0 = arith.constant 0 : i32
    %c0_i32_1 = arith.constant 0 : i32
    return %arg0, %c0_i32, %c0_i32_0 : i32, i32, i32
  }
}

</mosaic_0001>

<llo_original>
// kernel: tpu_custom_call.1
$region0: #{tpu_custom_call.1}
  #allocation0 [shape = 'u32[]', space=smem, size = 0x4, offset = 0x4, fixed_abs, tag = 'smem constant byte address 0x4 - core index']
  #allocation1 [shape = 'u32[144,128]{1,0:T(1,128)}', space=vmem, size = 0x12000, scoped, tag = 'internal scratch']
  #allocation2 [shape = 'f32[64,256]{1,0:T(8,128)}', space=vmem, size = 0x10000, scoped, tag = 'scratch operand']
  #allocation3 [shape = 's32[1]{0}', space=sflag, size = 0x4, scoped, tag = 'scoped memory for tpu_custom_call.1']
  #allocation4 [shape = 'u8[512]{0}', space=smem, size = 0x200, scoped, tag = 'prefetched SMEM operand 0']
  %s0 = inlined_call_operand.vmem [shape: s32[2], index: 0, kind: input, shape index: {}]
  %s1 = inlined_call_operand.vmem [shape: f32[2,64,32], index: 1, kind: input, shape index: {}]
  %s2 = inlined_call_operand.vmem [shape: s32[2,8,1], index: 2, kind: input, shape index: {}]
  %s3 = inlined_call_operand.vmem [shape: f32[2,32,256], index: 3, kind: input, shape index: {}]
  %s4 = inlined_call_operand.hbm [shape: f32[2,2,32,128], index: 4, kind: input, shape index: {}]
  %s5 = inlined_call_operand.vmem [shape: f32[2,1,256], index: 5, kind: input, shape index: {}]
  %s6 = inlined_call_operand.hbm [shape: f32[2,8,64], index: 6, kind: output, shape index: {}]
  %s7 = sld [smem:[#allocation0]]
  $region64: #{tpu_custom_call.1} parent=0
    _
  %s9 = ssub.s32 1, %s7
  %s10 = scalar_select 0, %s9, %s7
  %s11 = sshll.u32 %s0, 4
  %s12 = int_to_ptr.vmem [resolvable:$true] %s11
  %14 = dma.vmem_to_smem %s12, 16, [#allocation4], [#allocation3]
  %15 = dma.done [#allocation3], 16
  %16 = sfence
  $region1: #{tpu_custom_call.1} parent=0
    #allocation5 [shape = 'u8[65536]{0}', space=vmem, size = 0x10000, scoped, tag = 'input window, operand 4']
    #allocation6 [shape = 's32[2]{0}', space=sflag, size = 0x8, scoped, tag = 'scoped memory for tpu_custom_call.1']
    #allocation7 [shape = 's32[2]{0}', space=sflag, size = 0x8, scoped, tag = 'scoped memory for tpu_custom_call.1']
    #allocation8 [shape = 'u8[8192]{0}', space=vmem, size = 0x2000, scoped, tag = 'output window, operand 0']
    %17 = vsyncpa [#allocation6], 0
    %s18 = scalar_lea.sflag [#allocation6], 1
    %19 = vsyncpa %s18, 0
    %20 = vsyncpa [#allocation7], 0
    %s21 = scalar_lea.sflag [#allocation7], 1
    %22 = vsyncpa %s21, 0
    loop: start=0, step=1, limit=4
    $region2: #{tpu_custom_call.1} parent=1 // loop_pre_header
      _
    $region3: #{tpu_custom_call.1} parent=1 // loop_header
      %s24 = sphi 0, %s28
      %p25 = scmp.ge.s32.totalorder %s24, 4
      %s34 = sphi 0, %s36
      %s37 = sphi 0, %s34
      %s38 = sphi 0, %s37
      %s54 = sphi 0, %s38
      %s60 = sphi 0, %s62
      %s63 = sphi 0, %s60
      %s64 = sphi 0, %s63
      %s80 = sphi 0, %s64
      %s86 = sphi 0, %s88
      %s89 = sphi 0, %s86
      %s90 = sphi 0, %s89
      %s106 = sphi 0, %s90
      %s112 = sphi 0, %s114
      %s115 = sphi 0, %s112
      %s116 = sphi 0, %s115
      %s132 = sphi 0, %s116
      %s138 = sphi 0, %s140
      %s141 = sphi 0, %s138
      %s142 = sphi 0, %s141
      %s158 = sphi 0, %s142
      %s164 = sphi 0, %s166
      %s167 = sphi 0, %s164
      %s168 = sphi 0, %s167
      %s184 = sphi 0, %s168
    $region4: #{tpu_custom_call.1} parent=1 // loop_header_branch
      %27 = sbr.rel (%p25) target = $region8
    $region5: #{tpu_custom_call.1} parent=1 // loop_body
      %s29 = ssub.s32 %s24, 1
      %s30 = ssub.s32 %s24, 2
      %s31 = sadd.s32 %s24, 1
      %s32 = ssub.s32 %s24, %s31
      %p33 = scmp.eq.s32.totalorder %s32, 0
      %s35 = sadd.s32 %s34, 1
      %s36 = scalar_select %p33, %s34, %s35
      %p39 = pneg %p33
      %p40 = scmp.eq.s32.totalorder %s24, 1
      %p41 = por %p39, %p40
      %p42 = scmp.ne.s32.totalorder %s34, %s37
      %p43 = scmp.eq.s32.totalorder %s24, 0
      %p44 = por %p42, %p43
      %p45 = scmp.ne.s32.totalorder %s34, %s37
      %p46 = scmp.eq.s32.totalorder %s29, 1
      %p47 = por %p45, %p46
      %p48 = scmp.ne.s32.totalorder %s37, %s38
      %p49 = scmp.eq.s32.totalorder %s29, 0
      %p50 = por %p48, %p49
      %p51 = scmp.ne.s32.totalorder %s37, %s38
      %p52 = scmp.eq.s32.totalorder %s30, 1
      %p53 = por %p51, %p52
      %p55 = scmp.ne.s32.totalorder %s38, %s54
      %p56 = scmp.eq.s32.totalorder %s30, 0
      %p57 = por %p55, %p56
      %s58 = ssub.s32 %s24, %s31
      %p59 = scmp.eq.s32.totalorder %s58, 0
      %s61 = sadd.s32 %s60, 1
      %s62 = scalar_select %p59, %s60, %s61
      %p65 = pneg %p59
      %p66 = scmp.eq.s32.totalorder %s24, 1
      %p67 = por %p65, %p66
      %p68 = scmp.ne.s32.totalorder %s60, %s63
      %p69 = scmp.eq.s32.totalorder %s24, 0
      %p70 = por %p68, %p69
      %p71 = scmp.ne.s32.totalorder %s60, %s63
      %p72 = scmp.eq.s32.totalorder %s29, 1
      %p73 = por %p71, %p72
      %p74 = scmp.ne.s32.totalorder %s63, %s64
      %p75 = scmp.eq.s32.totalorder %s29, 0
      %p76 = por %p74, %p75
      %p77 = scmp.ne.s32.totalorder %s63, %s64
      %p78 = scmp.eq.s32.totalorder %s30, 1
      %p79 = por %p77, %p78
      %p81 = scmp.ne.s32.totalorder %s64, %s80
      %p82 = scmp.eq.s32.totalorder %s30, 0
      %p83 = por %p81, %p82
      %s84 = ssub.s32 %s24, %s31
      %p85 = scmp.eq.s32.totalorder %s84, 0
      %s87 = sadd.s32 %s86, 1
      %s88 = scalar_select %p85, %s86, %s87
      %p91 = pneg %p85
      %p92 = scmp.eq.s32.totalorder %s24, 1
      %p93 = por %p91, %p92
      %p94 = scmp.ne.s32.totalorder %s86, %s89
      %p95 = scmp.eq.s32.totalorder %s24, 0
      %p96 = por %p94, %p95
      %p97 = scmp.ne.s32.totalorder %s86, %s89
      %p98 = scmp.eq.s32.totalorder %s29, 1
      %p99 = por %p97, %p98
      %p100 = scmp.ne.s32.totalorder %s89, %s90
      %p101 = scmp.eq.s32.totalorder %s29, 0
      %p102 = por %p100, %p101
      %p103 = scmp.ne.s32.totalorder %s89, %s90
      %p104 = scmp.eq.s32.totalorder %s30, 1
      %p105 = por %p103, %p104
      %p107 = scmp.ne.s32.totalorder %s90, %s106
      %p108 = scmp.eq.s32.totalorder %s30, 0
      %p109 = por %p107, %p108
      %s110 = ssub.s32 %s24, %s31
      %p111 = scmp.eq.s32.totalorder %s110, 0
      %s113 = sadd.s32 %s112, 1
      %s114 = scalar_select %p111, %s112, %s113
      %p117 = pneg %p111
      %p118 = scmp.eq.s32.totalorder %s24, 1
      %p119 = por %p117, %p118
      %p120 = scmp.ne.s32.totalorder %s112, %s115
      %p121 = scmp.eq.s32.totalorder %s24, 0
      %p122 = por %p120, %p121
      %p123 = scmp.ne.s32.totalorder %s112, %s115
      %p124 = scmp.eq.s32.totalorder %s29, 1
      %p125 = por %p123, %p124
      %p126 = scmp.ne.s32.totalorder %s115, %s116
      %p127 = scmp.eq.s32.totalorder %s29, 0
      %p128 = por %p126, %p127
      %p129 = scmp.ne.s32.totalorder %s115, %s116
      %p130 = scmp.eq.s32.totalorder %s30, 1
      %p131 = por %p129, %p130
      %p133 = scmp.ne.s32.totalorder %s116, %s132
      %p134 = scmp.eq.s32.totalorder %s30, 0
      %p135 = por %p133, %p134
      %s136 = ssub.s32 %s24, %s31
      %p137 = scmp.eq.s32.totalorder %s136, 0
      %s139 = sadd.s32 %s138, 1
      %s140 = scalar_select %p137, %s138, %s139
      %p143 = pneg %p137
      %p144 = scmp.eq.s32.totalorder %s24, 1
      %p145 = por %p143, %p144
      %p146 = scmp.ne.s32.totalorder %s138, %s141
      %p147 = scmp.eq.s32.totalorder %s24, 0
      %p148 = por %p146, %p147
      %p149 = scmp.ne.s32.totalorder %s138, %s141
      %p150 = scmp.eq.s32.totalorder %s29, 1
      %p151 = por %p149, %p150
      %p152 = scmp.ne.s32.totalorder %s141, %s142
      %p153 = scmp.eq.s32.totalorder %s29, 0
      %p154 = por %p152, %p153
      %p155 = scmp.ne.s32.totalorder %s141, %s142
      %p156 = scmp.eq.s32.totalorder %s30, 1
      %p157 = por %p155, %p156
      %p159 = scmp.ne.s32.totalorder %s142, %s158
      %p160 = scmp.eq.s32.totalorder %s30, 0
      %p161 = por %p159, %p160
      %s162 = ssub.s32 %s24, %s31
      %p163 = scmp.eq.s32.totalorder %s162, 0
      %s165 = sadd.s32 %s164, 1
      %s166 = scalar_select %p163, %s164, %s165
      %p169 = pneg %p163
      %p170 = scmp.eq.s32.totalorder %s24, 1
      %p171 = por %p169, %p170
      %p172 = scmp.ne.s32.totalorder %s164, %s167
      %p173 = scmp.eq.s32.totalorder %s24, 0
      %p174 = por %p172, %p173
      %p175 = scmp.ne.s32.totalorder %s164, %s167
      %p176 = scmp.eq.s32.totalorder %s29, 1
      %p177 = por %p175, %p176
      %p178 = scmp.ne.s32.totalorder %s167, %s168
      %p179 = scmp.eq.s32.totalorder %s29, 0
      %p180 = por %p178, %p179
      %p181 = scmp.ne.s32.totalorder %s167, %s168
      %p182 = scmp.eq.s32.totalorder %s30, 1
      %p183 = por %p181, %p182
      %p185 = scmp.ne.s32.totalorder %s168, %s184
      %p186 = scmp.eq.s32.totalorder %s30, 0
      %p187 = por %p185, %p186
      %p188 = scmp.le.s32.totalorder 1, %s24
      %p189 = scmp.lt.s32.totalorder %s24, 3
      %p190 = pnand %p188, %p189
      %p191 = pneg %p190
      // Predicated region
      $region9: #{tpu_custom_call.1} parent=5 // pred_check
        _
      $region10: #{tpu_custom_call.1} parent=5 // pred_check_branch
        %193 = sbr.rel (%p190) target = $region12
      $region11: #{tpu_custom_call.1} parent=5 // pred_region
        %s194 = ssub.s32 %s24, 1
      $region12: #{tpu_custom_call.1} parent=5 // pred_fallthru
        _
      %p195 = scmp.lt.s32.totalorder %s24, 2
      // Predicated region
      $region13: #{tpu_custom_call.1} parent=5 // pred_check
        %p196 = pneg %p195
      $region14: #{tpu_custom_call.1} parent=5 // pred_check_branch
        %198 = sbr.rel (%p196) target = $region16
      $region15: #{tpu_custom_call.1} parent=5 // pred_region
        // Predicated region
        $region17: #{tpu_custom_call.1} parent=15 // pred_check
          %p199 = pneg %p44
        $region18: #{tpu_custom_call.1} parent=15 // pred_check_branch
          %201 = sbr.rel (%p199) target = $region20
        $region19: #{tpu_custom_call.1} parent=15 // pred_region
          %p202 = scmp.lt.s32.totalorder %s24, 1
          %s203 = scalar_select %p202, %s24, 1
          %s204 = smul.addr %s203, 8
          %s205 = smul.addr %s204, 8
          %s206 = scalar_lea.vmem %s1, %s205
        $region20: #{tpu_custom_call.1} parent=15 // pred_fallthru
          _
        // Predicated region
        $region21: #{tpu_custom_call.1} parent=15 // pred_check
          %p207 = pneg %p70
        $region22: #{tpu_custom_call.1} parent=15 // pred_check_branch
          %209 = sbr.rel (%p207) target = $region24
        $region23: #{tpu_custom_call.1} parent=15 // pred_region
          %p210 = scmp.lt.s32.totalorder %s24, 1
          %s211 = scalar_select %p210, %s24, 1
          %s212 = smul.addr %s211, 8
          %s213 = scalar_lea.vmem %s2, %s212
        $region24: #{tpu_custom_call.1} parent=15 // pred_fallthru
          _
        // Predicated region
        $region25: #{tpu_custom_call.1} parent=15 // pred_check
          %p214 = pneg %p96
        $region26: #{tpu_custom_call.1} parent=15 // pred_check_branch
          %216 = sbr.rel (%p214) target = $region28
        $region27: #{tpu_custom_call.1} parent=15 // pred_region
          %p217 = scmp.lt.s32.totalorder %s24, 1
          %s218 = scalar_select %p217, %s24, 1
          %s219 = smul.addr %s218, 8
          %s220 = smul.addr %s219, 8
          %s221 = scalar_lea.vmem %s3, %s220
        $region28: #{tpu_custom_call.1} parent=15 // pred_fallthru
          _
        // Predicated region
        $region29: #{tpu_custom_call.1} parent=15 // pred_check
          %p222 = pneg %p122
        $region30: #{tpu_custom_call.1} parent=15 // pred_check_branch
          %224 = sbr.rel (%p222) target = $region32
        $region31: #{tpu_custom_call.1} parent=15 // pred_region
          %s225 = sand.u32 %s112, 1
          %s226 = scalar_lea.sflag [#allocation6], %s225
          %s227 = sand.u32 %s112, 1
          %s228 = smul.addr %s227, 64
          %s229 = scalar_lea.vmem [#allocation5], %s228
          %s231 = ssub.s32 1024, 1024
          %232 = vsyncadd %s226, %s231
          %s233 = smul.addr %s24, 8
          %s234 = smul.addr %s233, 128
          %s235 = scalar_lea.hbm %s4, %s234
          %s236 = sshll.u32 %s229, 4
          %s237 = int_to_ptr.vmem [resolvable:$true] %s236
          %242 = dma.hbm_to_vmem [thread:$0]  %s235, 1024, %s237, %s226, 128, 128, 8
        $region32: #{tpu_custom_call.1} parent=15 // pred_fallthru
          _
        // Predicated region
        $region33: #{tpu_custom_call.1} parent=15 // pred_check
          %p243 = pneg %p148
        $region34: #{tpu_custom_call.1} parent=15 // pred_check_branch
          %245 = sbr.rel (%p243) target = $region36
        $region35: #{tpu_custom_call.1} parent=15 // pred_region
          %p246 = scmp.lt.s32.totalorder %s24, 1
          %s247 = scalar_select %p246, %s24, 1
          %s248 = smul.addr %s247, 2
          %s249 = scalar_lea.vmem %s5, %s248
        $region36: #{tpu_custom_call.1} parent=15 // pred_fallthru
          _
      $region16: #{tpu_custom_call.1} parent=5 // pred_fallthru
        _
      %p250 = scmp.le.s32.totalorder 1, %s24
      %p251 = scmp.lt.s32.totalorder %s24, 3
      %p252 = pnand %p250, %p251
      %p253 = pneg %p252
      // Predicated region
      $region37: #{tpu_custom_call.1} parent=5 // pred_check
        _
      $region38: #{tpu_custom_call.1} parent=5 // pred_check_branch
        %255 = sbr.rel (%p252) target = $region40
      $region39: #{tpu_custom_call.1} parent=5 // pred_region
        %s256 = ssub.s32 %s24, 1
        %s257 = sand.u32 %s115, 1
        %s258 = scalar_lea.sflag [#allocation6], %s257
        %s259 = sand.u32 %s115, 1
        %s260 = smul.addr %s259, 64
        %s261 = scalar_lea.vmem [#allocation5], %s260
        // Predicated region
        $region41: #{tpu_custom_call.1} parent=39 // pred_check
          %p262 = pneg %p128
        $region42: #{tpu_custom_call.1} parent=39 // pred_check_branch
          %264 = sbr.rel (%p262) target = $region44
        $region43: #{tpu_custom_call.1} parent=39 // pred_region
          %265 = dma.done %s258, 1024
        $region44: #{tpu_custom_call.1} parent=39 // pred_fallthru
          _
        %p266 = scmp.lt.s32.totalorder %s29, 1
        %s267 = scalar_select %p266, %s29, 1
        %s268 = smul.addr %s267, 8
        %s269 = smul.addr %s268, 8
        %s270 = scalar_lea.vmem %s1, %s269
        %p271 = pneg %p50
        %p272 = pneg %p47
        %p273 = scmp.lt.s32.totalorder %s29, 1
        %s274 = scalar_select %p273, %s29, 1
        %s275 = smul.addr %s274, 8
        %s276 = scalar_lea.vmem %s2, %s275
        %p277 = pneg %p76
        %p278 = pneg %p73
        %p279 = scmp.lt.s32.totalorder %s29, 1
        %s280 = scalar_select %p279, %s29, 1
        %s281 = smul.addr %s280, 8
        %s282 = smul.addr %s281, 8
        %s283 = scalar_lea.vmem %s3, %s282
        %p284 = pneg %p102
        %p285 = pneg %p99
        %s286 = sand.u32 %s115, 1
        %s287 = scalar_lea.sflag [#allocation6], %s286
        %s288 = sand.u32 %s115, 1
        %s289 = smul.addr %s288, 64
        %s290 = scalar_lea.vmem [#allocation5], %s289
        %p291 = pneg %p128
        %p292 = pneg %p125
        %p293 = scmp.lt.s32.totalorder %s29, 1
        %s294 = scalar_select %p293, %s29, 1
        %s295 = smul.addr %s294, 2
        %s296 = scalar_lea.vmem %s5, %s295
        %p297 = pneg %p154
        %p298 = pneg %p151
        %p299 = pneg %p180
        %p300 = pneg %p177
        %s301 = sand.u32 %s167, 1
        %s302 = scalar_lea.sflag [#allocation7], %s301
        %s303 = sand.u32 %s167, 1
        %s304 = smul.addr %s303, 8
        %s305 = scalar_lea.vmem [#allocation8], %s304
        %p306 = scmp.lt.s32.totalorder %s29, 1
        %s307 = scalar_select %p306, %s29, 1
        %s308 = smul.addr %s307, 8
        %s309 = smul.addr %s308, 8
        %s310 = scalar_lea.vmem %s1, %s309
        %p311 = scmp.lt.s32.totalorder %s29, 1
        %s312 = scalar_select %p311, %s29, 1
        %s313 = smul.addr %s312, 8
        %s314 = scalar_lea.vmem %s2, %s313
        %p315 = scmp.lt.s32.totalorder %s29, 1
        %s316 = scalar_select %p315, %s29, 1
        %s317 = smul.addr %s316, 8
        %s318 = smul.addr %s317, 8
        %s319 = scalar_lea.vmem %s3, %s318
        %p320 = scmp.lt.s32.totalorder %s29, 1
        %s321 = scalar_select %p320, %s29, 1
        %s322 = smul.addr %s321, 2
        %s323 = scalar_lea.vmem %s5, %s322
        %s324 = sld [smem:[#allocation4 + %s29]]
        %v325 = vld [vmem:[%s310] sm:$0xff]
        %v326 = vld [vmem:[%s310 + $0x8] sm:$0xff]
        %v327 = vld [vmem:[%s310 + $0x10] sm:$0xff]
        %v328 = vld [vmem:[%s310 + $0x18] sm:$0xff]
        %v329 = vld [vmem:[%s310 + $0x20] sm:$0xff]
        %v330 = vld [vmem:[%s310 + $0x28] sm:$0xff]
        %v331 = vld [vmem:[%s310 + $0x30] sm:$0xff]
        %v332 = vld [vmem:[%s310 + $0x38] sm:$0xff]
        %v333 = vld [vmem:[%s319] sm:$0xff]
        %v334 = vld [vmem:[%s319 + $0x8] sm:$0xff]
        %v335 = vld [vmem:[%s319 + $0x10] sm:$0xff]
        %v336 = vld [vmem:[%s319 + $0x18] sm:$0xff]
        %v337 = vld [vmem:[%s319 + $0x20] sm:$0xff]
        %v338 = vld [vmem:[%s319 + $0x28] sm:$0xff]
        %v339 = vld [vmem:[%s319 + $0x30] sm:$0xff]
        %v340 = vld [vmem:[%s319 + $0x38] sm:$0xff]
        %v341 = vld [vmem:[%s323] sm:$0x3]
        %v343 = vlaneseq
        %v344 = vshrl.u32 %v343, 7
        %v345 = vsub.s32 0, %v344
        %v346 = vrot.slane %v341, %v345
        %v347 = vlaneseq
        %v348 = vshrl.u32 %v347, 7
        %v349 = vsub.s32 1, %v348
        %v350 = vrot.slane %v341, %v349
        %vm353 = vcmask 261120
        %v355 = vsel %vm353, %v325, 0
        %v358 = vsel %vm353, %v326, 0
        %v361 = vsel %vm353, %v327, 0
        %v364 = vsel %vm353, %v328, 0
        %v367 = vsel %vm353, %v329, 0
        %v370 = vsel %vm353, %v330, 0
        %v373 = vsel %vm353, %v331, 0
        %v376 = vsel %vm353, %v332, 0
        %378 = vmatprep.subr.mxu0 %v334
        %379 = vmatpush1.msra.mxu0 %v333
        %380 = vmatprep.subr.mxu0 %v336
        %381 = vmatpush1.msra.mxu0 %v335
        %382 = vmatprep.subr.mxu0 %v338
        %383 = vmatpush1.msra.mxu0 %v337
        %384 = vmatprep.subr.mxu0 %v340
        %385 = vmatpush1.msra.mxu0 %v339
        %386 = vmatprep.subr.mxu0 0.0
        %387 = vmatpush1.msra.mxu0 0.0
        %388 = vmatprep.subr.mxu0 0.0
        %389 = vmatpush1.msra.mxu0 0.0
        %390 = vmatprep.subr.mxu0 0.0
        %391 = vmatpush1.msra.mxu0 0.0
        %392 = vmatprep.subr.mxu0 0.0
        %393 = vmatpush1.msra.mxu0 0.0
        %394 = vmatprep.subr.mxu0 0.0
        %395 = vmatpush1.msra.mxu0 0.0
        %396 = vmatprep.subr.mxu0 0.0
        %397 = vmatpush1.msra.mxu0 0.0
        %398 = vmatprep.subr.mxu0 0.0
        %399 = vmatpush1.msra.mxu0 0.0
        %400 = vmatprep.subr.mxu0 0.0
        %401 = vmatpush1.msra.mxu0 0.0
        %402 = vmatprep.subr.mxu0 0.0
        %403 = vmatpush1.msra.mxu0 0.0
        %404 = vmatprep.subr.mxu0 0.0
        %405 = vmatpush1.msra.mxu0 0.0
        %406 = vmatprep.subr.mxu0 0.0
        %407 = vmatpush1.msra.mxu0 0.0
        %408 = vmatprep.subr.mxu0 0.0
        %409 = vmatpush1.msra.mxu0 0.0
        %410 = vmatprep.subr.mxu0 0.0
        %411 = vmatpush1.msra.mxu0 0.0
        %412 = vmatprep.subr.mxu0 0.0
        %413 = vmatpush1.msra.mxu0 0.0
        %414 = vmatprep.subr.mxu0 0.0
        %415 = vmatpush1.msra.mxu0 0.0
        %416 = vmatprep.subr.mxu0 0.0
        %417 = vmatpush1.msra.mxu0 0.0
        %418 = vmatprep.subr.mxu0 0.0
        %419 = vmatpush1.msra.mxu0 0.0
        %420 = vmatprep.subr.mxu0 0.0
        %421 = vmatpush1.msra.mxu0 0.0
        %422 = vmatprep.subr.mxu0 0.0
        %423 = vmatpush1.msra.mxu0 0.0
        %424 = vmatprep.subr.mxu0 0.0
        %425 = vmatpush1.msra.mxu0 0.0
        %426 = vmatprep.subr.mxu0 0.0
        %427 = vmatpush1.msra.mxu0 0.0
        %428 = vmatprep.subr.mxu0 0.0
        %429 = vmatpush1.msra.mxu0 0.0
        %430 = vmatprep.subr.mxu0 0.0
        %431 = vmatpush1.msra.mxu0 0.0
        %432 = vmatprep.subr.mxu0 0.0
        %433 = vmatpush1.msra.mxu0 0.0
        %434 = vmatprep.subr.mxu0 0.0
        %435 = vmatpush1.msra.mxu0 0.0
        %436 = vmatprep.subr.mxu0 0.0
        %437 = vmatpush1.msra.mxu0 0.0
        %438 = vmatprep.subr.mxu0 0.0
        %439 = vmatpush1.msra.mxu0 0.0
        %440 = vmatprep.subr.mxu0 0.0
        %441 = vmatpush1.msra.mxu0 0.0
        %442 = vmatprep.mubr.f32.mxu0 0.0
        %443 = vmatmul.mubr.f32.gmra.mrb[0].mxu0 %v355
        %v444 = vpop.f32.mrb[0].mxu0
        %v445 = vadd.f32 %v346, %v444
        %v446 = vpop.f32.mrb[0].mxu0
        %v447 = vadd.f32 %v350, %v446
        %448 = vmatprep.mubr.f32.mxu0 0.0
        %449 = vmatmul.mubr.f32.gmra.mrb[0].mxu0 %v358
        %v450 = vpop.f32.mrb[0].mxu0
        %v451 = vadd.f32 %v346, %v450
        %v452 = vpop.f32.mrb[0].mxu0
        %v453 = vadd.f32 %v350, %v452
        %454 = vmatprep.mubr.f32.mxu0 0.0
        %455 = vmatmul.mubr.f32.gmra.mrb[0].mxu0 %v361
        %v456 = vpop.f32.mrb[0].mxu0
        %v457 = vadd.f32 %v346, %v456
        %v458 = vpop.f32.mrb[0].mxu0
        %v459 = vadd.f32 %v350, %v458
        %460 = vmatprep.mubr.f32.mxu0 0.0
        %461 = vmatmul.mubr.f32.gmra.mrb[0].mxu0 %v364
        %v462 = vpop.f32.mrb[0].mxu0
        %v463 = vadd.f32 %v346, %v462
        %v464 = vpop.f32.mrb[0].mxu0
        %v465 = vadd.f32 %v350, %v464
        %466 = vmatprep.mubr.f32.mxu0 0.0
        %467 = vmatmul.mubr.f32.gmra.mrb[0].mxu0 %v367
        %v468 = vpop.f32.mrb[0].mxu0
        %v469 = vadd.f32 %v346, %v468
        %v470 = vpop.f32.mrb[0].mxu0
        %v471 = vadd.f32 %v350, %v470
        %472 = vmatprep.mubr.f32.mxu0 0.0
        %473 = vmatmul.mubr.f32.gmra.mrb[0].mxu0 %v370
        %v474 = vpop.f32.mrb[0].mxu0
        %v475 = vadd.f32 %v346, %v474
        %v476 = vpop.f32.mrb[0].mxu0
        %v477 = vadd.f32 %v350, %v476
        %478 = vmatprep.mubr.f32.mxu0 0.0
        %479 = vmatmul.mubr.f32.gmra.mrb[0].mxu0 %v373
        %v480 = vpop.f32.mrb[0].mxu0
        %v481 = vadd.f32 %v346, %v480
        %v482 = vpop.f32.mrb[0].mxu0
        %v483 = vadd.f32 %v350, %v482
        %484 = vmatprep.mubr.f32.mxu0 0.0
        %485 = vmatmul.mubr.f32.gmra.mrb[0].mxu0 %v376
        %v486 = vpop.f32.mrb[0].mxu0
        %v487 = vadd.f32 %v346, %v486
        %v488 = vpop.f32.mrb[0].mxu0
        %v489 = vadd.f32 %v350, %v488
        %490 = vdwg.mxu0
        %491 = vst [vmem:[#allocation2] sm:$0xff] %v445
        %492 = vst [vmem:[#allocation2 + $0x8] sm:$0xff] %v447
        %493 = vst [vmem:[#allocation2 + $0x10] sm:$0xff] %v451
        %494 = vst [vmem:[#allocation2 + $0x18] sm:$0xff] %v453
        %495 = vst [vmem:[#allocation2 + $0x20] sm:$0xff] %v457
        %496 = vst [vmem:[#allocation2 + $0x28] sm:$0xff] %v459
        %497 = vst [vmem:[#allocation2 + $0x30] sm:$0xff] %v463
        %498 = vst [vmem:[#allocation2 + $0x38] sm:$0xff] %v465
        %499 = vst [vmem:[#allocation2 + $0x40] sm:$0xff] %v469
        %500 = vst [vmem:[#allocation2 + $0x48] sm:$0xff] %v471
        %501 = vst [vmem:[#allocation2 + $0x50] sm:$0xff] %v475
        %502 = vst [vmem:[#allocation2 + $0x58] sm:$0xff] %v477
        %503 = vst [vmem:[#allocation2 + $0x60] sm:$0xff] %v481
        %504 = vst [vmem:[#allocation2 + $0x68] sm:$0xff] %v483
        %505 = vst [vmem:[#allocation2 + $0x70] sm:$0xff] %v487
        %506 = vst [vmem:[#allocation2 + $0x78] sm:$0xff] %v489
        %v507 = vld [vmem:[%s314] sm:$0xff]
        %v508 = vld [vmem:[%s261] sm:$0xff]
        %v509 = vld [vmem:[%s261 + $0x8] sm:$0xff]
        %v510 = vld [vmem:[%s261 + $0x10] sm:$0xff]
        %v511 = vld [vmem:[%s261 + $0x18] sm:$0xff]
        %s512 = scalar_lea.vmem %s261, 32 [#allocation5]
        %v513 = vld [vmem:[%s512] sm:$0xff]
        %v514 = vld [vmem:[%s512 + $0x8] sm:$0xff]
        %v515 = vld [vmem:[%s512 + $0x10] sm:$0xff]
        %v516 = vld [vmem:[%s512 + $0x18] sm:$0xff]
        // While loop
        $region45: #{tpu_custom_call.1} parent=39 // loop_pre_header
          _
        $region46: #{tpu_custom_call.1} parent=39 // loop_header
          %s518 = sphi 0, %s520
          %p519 = scmp.ge.s32.totalorder %s518, %s324
          %v523 = vphi 0.0, %v752
          %v524 = vphi 0.0, %v753
          %v525 = vphi 0.0, %v759
          %v526 = vphi 0.0, %v760
        $region47: #{tpu_custom_call.1} parent=39 // loop_header_branch
          %522 = sbr.rel (%p519) target = $region51
        $region48: #{tpu_custom_call.1} parent=39 // loop_body
          %s527 = ssub.s32 %s324, 1
          %s528 = ssub.s32 %s527, %s518
          %s529 = smul.u32 %s518, 8
          %s530 = smul.u32 %s528, 8
          %s531 = sshra.s32 %s529, 3
          %s532 = sand.u32 %s529, 7
          %s533 = smul.u32 %s531, 2
          %s534 = smul.addr %s533, 8
          %s535 = scalar_lea.vmem [#allocation2], %s534
          %v536 = vld [vmem:[%s535] sm:$0xff]
          %s537 = sshra.s32 %s530, 3
          %s538 = sand.u32 %s530, 7
          %s539 = smul.u32 %s537, 2
          %s540 = smul.addr %s539, 8
          %s541 = scalar_lea.vmem [#allocation2], %s540
          %v542 = vld [vmem:[%s541 + $0x8] sm:$0xff]
          %544 = vrot.lane.b32.xlu0 %v523, 32
          %v545 = vpop.permute.xlu0 %544
          %v546 = vsel %vm353, %v545, 0
          %548 = vmatprep.subr.mxu0 0.0
          %549 = vmatpush1.msra.mxu0 %v508
          %550 = vmatprep.subr.mxu0 0.0
          %551 = vmatpush1.msra.mxu0 %v509
          %552 = vmatprep.subr.mxu0 0.0
          %553 = vmatpush1.msra.mxu0 %v510
          %554 = vmatprep.subr.mxu0 0.0
          %555 = vmatpush1.msra.mxu0 %v511
          %556 = vmatprep.subr.mxu0 0.0
          %557 = vmatpush1.msra.mxu0 0.0
          %558 = vmatprep.subr.mxu0 0.0
          %559 = vmatpush1.msra.mxu0 0.0
          %560 = vmatprep.subr.mxu0 0.0
          %561 = vmatpush1.msra.mxu0 0.0
          %562 = vmatprep.subr.mxu0 0.0
          %563 = vmatpush1.msra.mxu0 0.0
          %564 = vmatprep.subr.mxu0 0.0
          %565 = vmatpush1.msra.mxu0 0.0
          %566 = vmatprep.subr.mxu0 0.0
          %567 = vmatpush1.msra.mxu0 0.0
          %568 = vmatprep.subr.mxu0 0.0
          %569 = vmatpush1.msra.mxu0 0.0
          %570 = vmatprep.subr.mxu0 0.0
          %571 = vmatpush1.msra.mxu0 0.0
          %572 = vmatprep.subr.mxu0 0.0
          %573 = vmatpush1.msra.mxu0 0.0
          %574 = vmatprep.subr.mxu0 0.0
          %575 = vmatpush1.msra.mxu0 0.0
          %576 = vmatprep.subr.mxu0 0.0
          %577 = vmatpush1.msra.mxu0 0.0
          %578 = vmatprep.subr.mxu0 0.0
          %579 = vmatpush1.msra.mxu0 0.0
          %580 = vmatprep.subr.mxu0 0.0
          %581 = vmatpush1.msra.mxu0 0.0
          %582 = vmatprep.subr.mxu0 0.0
          %583 = vmatpush1.msra.mxu0 0.0
          %584 = vmatprep.subr.mxu0 0.0
          %585 = vmatpush1.msra.mxu0 0.0
          %586 = vmatprep.subr.mxu0 0.0
          %587 = vmatpush1.msra.mxu0 0.0
          %588 = vmatprep.subr.mxu0 0.0
          %589 = vmatpush1.msra.mxu0 0.0
          %590 = vmatprep.subr.mxu0 0.0
          %591 = vmatpush1.msra.mxu0 0.0
          %592 = vmatprep.subr.mxu0 0.0
          %593 = vmatpush1.msra.mxu0 0.0
          %594 = vmatprep.subr.mxu0 0.0
          %595 = vmatpush1.msra.mxu0 0.0
          %596 = vmatprep.subr.mxu0 0.0
          %597 = vmatpush1.msra.mxu0 0.0
          %598 = vmatprep.subr.mxu0 0.0
          %599 = vmatpush1.msra.mxu0 0.0
          %600 = vmatprep.subr.mxu0 0.0
          %601 = vmatpush1.msra.mxu0 0.0
          %602 = vmatprep.subr.mxu0 0.0
          %603 = vmatpush1.msra.mxu0 0.0
          %604 = vmatprep.subr.mxu0 0.0
          %605 = vmatpush1.msra.mxu0 0.0
          %606 = vmatprep.subr.mxu0 0.0
          %607 = vmatpush1.msra.mxu0 0.0
          %608 = vmatprep.subr.mxu0 0.0
          %609 = vmatpush1.msra.mxu0 0.0
          %610 = vmatprep.subr.mxu0 0.0
          %611 = vmatpush1.msra.mxu0 0.0
          %612 = vmatprep.mubr.f32.mxu0 0.0
          %613 = vmatmul.mubr.f32.gmra.mrb[0].mxu0 %v546
          %v614 = vpop.f32.mrb[0].mxu0
          %v615 = vadd.f32 0.0, %v614
          %v616 = vpop.f32.mrb[0].mxu0
          %617 = vdwg.mxu0
          %v618 = vadd.f32 %v536, %v615
          %620 = vrot.lane.b32.xlu0 %v525, 32
          %v621 = vpop.permute.xlu0 %620
          %v622 = vsel %vm353, %v621, 0
          %624 = vmatprep.subr.mxu0 0.0
          %625 = vmatpush1.msra.mxu0 %v513
          %626 = vmatprep.subr.mxu0 0.0
          %627 = vmatpush1.msra.mxu0 %v514
          %628 = vmatprep.subr.mxu0 0.0
          %629 = vmatpush1.msra.mxu0 %v515
          %630 = vmatprep.subr.mxu0 0.0
          %631 = vmatpush1.msra.mxu0 %v516
          %632 = vmatprep.subr.mxu0 0.0
          %633 = vmatpush1.msra.mxu0 0.0
          %634 = vmatprep.subr.mxu0 0.0
          %635 = vmatpush1.msra.mxu0 0.0
          %636 = vmatprep.subr.mxu0 0.0
          %637 = vmatpush1.msra.mxu0 0.0
          %638 = vmatprep.subr.mxu0 0.0
          %639 = vmatpush1.msra.mxu0 0.0
          %640 = vmatprep.subr.mxu0 0.0
          %641 = vmatpush1.msra.mxu0 0.0
          %642 = vmatprep.subr.mxu0 0.0
          %643 = vmatpush1.msra.mxu0 0.0
          %644 = vmatprep.subr.mxu0 0.0
          %645 = vmatpush1.msra.mxu0 0.0
          %646 = vmatprep.subr.mxu0 0.0
          %647 = vmatpush1.msra.mxu0 0.0
          %648 = vmatprep.subr.mxu0 0.0
          %649 = vmatpush1.msra.mxu0 0.0
          %650 = vmatprep.subr.mxu0 0.0
          %651 = vmatpush1.msra.mxu0 0.0
          %652 = vmatprep.subr.mxu0 0.0
          %653 = vmatpush1.msra.mxu0 0.0
          %654 = vmatprep.subr.mxu0 0.0
          %655 = vmatpush1.msra.mxu0 0.0
          %656 = vmatprep.subr.mxu0 0.0
          %657 = vmatpush1.msra.mxu0 0.0
          %658 = vmatprep.subr.mxu0 0.0
          %659 = vmatpush1.msra.mxu0 0.0
          %660 = vmatprep.subr.mxu0 0.0
          %661 = vmatpush1.msra.mxu0 0.0
          %662 = vmatprep.subr.mxu0 0.0
          %663 = vmatpush1.msra.mxu0 0.0
          %664 = vmatprep.subr.mxu0 0.0
          %665 = vmatpush1.msra.mxu0 0.0
          %666 = vmatprep.subr.mxu0 0.0
          %667 = vmatpush1.msra.mxu0 0.0
          %668 = vmatprep.subr.mxu0 0.0
          %669 = vmatpush1.msra.mxu0 0.0
          %670 = vmatprep.subr.mxu0 0.0
          %671 = vmatpush1.msra.mxu0 0.0
          %672 = vmatprep.subr.mxu0 0.0
          %673 = vmatpush1.msra.mxu0 0.0
          %674 = vmatprep.subr.mxu0 0.0
          %675 = vmatpush1.msra.mxu0 0.0
          %676 = vmatprep.subr.mxu0 0.0
          %677 = vmatpush1.msra.mxu0 0.0
          %678 = vmatprep.subr.mxu0 0.0
          %679 = vmatpush1.msra.mxu0 0.0
          %680 = vmatprep.subr.mxu0 0.0
          %681 = vmatpush1.msra.mxu0 0.0
          %682 = vmatprep.subr.mxu0 0.0
          %683 = vmatpush1.msra.mxu0 0.0
          %684 = vmatprep.subr.mxu0 0.0
          %685 = vmatpush1.msra.mxu0 0.0
          %686 = vmatprep.subr.mxu0 0.0
          %687 = vmatpush1.msra.mxu0 0.0
          %688 = vmatprep.mubr.f32.mxu0 0.0
          %689 = vmatmul.mubr.f32.gmra.mrb[0].mxu0 %v622
          %v690 = vpop.f32.mrb[0].mxu0
          %v691 = vadd.f32 0.0, %v690
          %v692 = vpop.f32.mrb[0].mxu0
          %693 = vdwg.mxu0
          %v694 = vadd.f32 %v542, %v691
          %v695 = vxor.u32 %v618, 2147483648
          %v696 = vmul.f32 %v695, 1.442695
          %v697 = vpow.pop %v696
          %v698 = vadd.f32 %v697, 1.0
          %v699 = vrcp.pop %v698
          %v700 = vmul.f32 1.0, %v699
          %v701 = vtanh.pop %v618
          %v702 = vmul.f32 %v700, %v524
          %704 = vrot.lane.b32.xlu0 %v701, 64
          %v705 = vpop.permute.xlu0 %704
          %v707 = vmul.f32 %v700, %v705
          %709 = vrot.lane.b32.xlu0 %v707, 32
          %v710 = vpop.permute.xlu0 %709
          %v712 = vadd.f32 %v702, %v710
          %v713 = vtanh.pop %v712
          %715 = vrot.lane.b32.xlu0 %v713, 64
          %v716 = vpop.permute.xlu0 %715
          %v718 = vmul.f32 %v700, %v716
          %v719 = vxor.u32 %v694, 2147483648
          %v720 = vmul.f32 %v719, 1.442695
          %v721 = vpow.pop %v720
          %v722 = vadd.f32 %v721, 1.0
          %v723 = vrcp.pop %v722
          %v724 = vmul.f32 1.0, %v723
          %v725 = vtanh.pop %v694
          %v726 = vmul.f32 %v724, %v526
          %728 = vrot.lane.b32.xlu0 %v725, 64
          %v729 = vpop.permute.xlu0 %728
          %v731 = vmul.f32 %v724, %v729
          %733 = vrot.lane.b32.xlu0 %v731, 32
          %v734 = vpop.permute.xlu0 %733
          %v736 = vadd.f32 %v726, %v734
          %v737 = vtanh.pop %v736
          %739 = vrot.lane.b32.xlu0 %v737, 64
          %v740 = vpop.permute.xlu0 %739
          %v742 = vmul.f32 %v724, %v740
          %v743 = vstv %s518
          %vm744 = vcmp.gt.s32.totalorder %v507, %v743
          %v745 = vstv %s528
          %vm746 = vcmp.gt.s32.totalorder %v507, %v745
          %v747 = vsel %vm744, 1, 0
          %748 = vset.pattern.permute.xlu0 0
          %749 = vperm.xlu0 %748, %v747
          %v750 = vpop.permute.xlu0 %749
          %vm751 = vcmp.eq.s32.totalorder %v750, 1
          %v752 = vsel %vm751, %v718, %v523
          %v753 = vsel %vm751, %v712, %v524
          %v754 = vsel %vm746, 1, 0
          %755 = vset.pattern.permute.xlu0 0
          %756 = vperm.xlu0 %755, %v754
          %v757 = vpop.permute.xlu0 %756
          %vm758 = vcmp.eq.s32.totalorder %v757, 1
          %v759 = vsel %vm758, %v742, %v525
          %v760 = vsel %vm758, %v736, %v526
        $region49: #{tpu_custom_call.1} parent=39 // loop_footer
          %s520 = sadd.s32 %s518, 1
        $region50: #{tpu_custom_call.1} parent=39 // loop_footer_branch
          %517 = sbr.rel target = $region46
        $region51: #{tpu_custom_call.1} parent=39 // loop_exit
          _
        %762 = vrot.lane.b32.xlu0 %v523, 32
        %v763 = vpop.permute.xlu0 %762
        %766 = vrot.lane.b32.xlu0 %v525, 64
        %v767 = vpop.permute.xlu0 %766
        %v769 = vsel %vm353, %v763, %v767
        %vm770 = vcmask 523264
        %771 = vst.msk [vmem:[%s305] sm:$0xff] %vm770, %v769
        %s772 = sand.u32 %s167, 1
        %s773 = scalar_lea.sflag [#allocation7], %s772
        %s774 = sand.u32 %s167, 1
        %s775 = smul.addr %s774, 8
        %s776 = scalar_lea.vmem [#allocation8], %s775
        // Predicated region
        $region52: #{tpu_custom_call.1} parent=39 // pred_check
          %p777 = pneg %p177
        $region53: #{tpu_custom_call.1} parent=39 // pred_check_branch
          %779 = sbr.rel (%p777) target = $region55
        $region54: #{tpu_custom_call.1} parent=39 // pred_region
          %s781 = ssub.s32 128, 128
          %782 = vsyncadd %s773, %s781
          %s783 = smul.addr %s29, 128
          %s784 = scalar_lea.hbm %s6, %s783
          %s786 = sshll.u32 %s776, 4
          %s787 = int_to_ptr.vmem [resolvable:$true] %s786
          %789 = dma.vmem_to_hbm [thread:$0]  %s787, 128, %s784, %s773
        $region55: #{tpu_custom_call.1} parent=39 // pred_fallthru
          _
      $region40: #{tpu_custom_call.1} parent=5 // pred_fallthru
        _
      %p790 = scmp.le.s32.totalorder 2, %s24
      // Predicated region
      $region56: #{tpu_custom_call.1} parent=5 // pred_check
        %p791 = pneg %p790
      $region57: #{tpu_custom_call.1} parent=5 // pred_check_branch
        %793 = sbr.rel (%p791) target = $region59
      $region58: #{tpu_custom_call.1} parent=5 // pred_region
        %s794 = ssub.s32 %s24, 2
        // Predicated region
        $region60: #{tpu_custom_call.1} parent=58 // pred_check
          %p795 = pneg %p183
        $region61: #{tpu_custom_call.1} parent=58 // pred_check_branch
          %797 = sbr.rel (%p795) target = $region63
        $region62: #{tpu_custom_call.1} parent=58 // pred_region
          %s798 = sand.u32 %s168, 1
          %s799 = scalar_lea.sflag [#allocation7], %s798
          %s800 = sand.u32 %s168, 1
          %s801 = smul.addr %s800, 8
          %s802 = scalar_lea.vmem [#allocation8], %s801
          %803 = dma.done %s799, 128
        $region63: #{tpu_custom_call.1} parent=58 // pred_fallthru
          _
      $region59: #{tpu_custom_call.1} parent=5 // pred_fallthru
        _
    $region6: #{tpu_custom_call.1} parent=1 // loop_footer
      %s28 = sadd.s32 1, %s24
    $region7: #{tpu_custom_call.1} parent=1 // loop_footer_branch
      %23 = sbr.rel target = $region3
    $region8: #{tpu_custom_call.1} parent=1 // loop_exit
      _
    %804 = vsyncpa [#allocation6], 1
    %s805 = scalar_lea.sflag [#allocation6], 1
    %806 = vsyncpa %s805, 1
    %807 = vsyncpa [#allocation7], 1
    %s808 = scalar_lea.sflag [#allocation7], 1
    %809 = vsyncpa %s808, 1

</llo_original>
